<compile_context>
chip_gen: v7x
topology: tpu7x:2x2x1
jax: 0.10.0
libtpu: 0.0.40
codegen_flags: <defaults>
</compile_context>

<pallas_src>
import jax
import jax.numpy as jnp
from jax.experimental import pallas as pl
from jax.experimental.pallas import tpu as pltpu


UNIT = 512              # pad / tile granularity (multiple of 128 and 256 MXU widths)
MAX_BATCH_TILE = 32768  # lanes per grid step cap (~1 MiB of x per step, v7x-safe)
VMEM_LIMIT_BYTES = 32 * 1024 * 1024


def mlp_kernel(x_ref, w1_ref, b1_ref, w2_ref, b2_ref, w3_ref, b3_ref, o_ref):
    # x_ref:  (num_input, TB)   -- batch rides the 128-lane axis
    # w*_ref: (out, in), b*_ref: (out, 1)
    # o_ref:  (1, TB)           -- lane-dense store
    x = x_ref[...]

    # layer_1 + ReLU : (8, 4) @ (4, TB) -> (8, TB)
    z1 = jnp.dot(w1_ref[...], x, preferred_element_type=jnp.float32) \
        + b1_ref[...].astype(jnp.float32)
    a1 = jnp.maximum(z1, 0.0)

    # layer_2 + ReLU : (8, 8) @ (8, TB) -> (8, TB)
    z2 = jnp.dot(w2_ref[...], a1, preferred_element_type=jnp.float32) \
        + b2_ref[...].astype(jnp.float32)
    a2 = jnp.maximum(z2, 0.0)

    # output layer (no activation) : (1, 8) @ (8, TB) -> (1, TB)
    z3 = jnp.dot(w3_ref[...], a2, preferred_element_type=jnp.float32) \
        + b3_ref[...].astype(jnp.float32)
    o_ref[...] = z3.astype(o_ref.dtype)


def _choose_batch_tiling(batch):
    """Pick (batch_tile, num_tiles, b_pad).

    - pad granularity is UNIT (512 lanes), never a full max-size tile
    - tile capped at MAX_BATCH_TILE (v7x 64 MiB VMEM budget)
    - when the batch allows it, use >= 2 grid steps (v7x megacore), then
      rebalance the tile to minimize padding waste.
    """
    num_units = max(1, pl.cdiv(batch, UNIT))
    max_units = MAX_BATCH_TILE // UNIT
    tile_units = max(1, min(max_units, pl.cdiv(num_units, 2)))  # aim for >= 2 tiles
    num_tiles = pl.cdiv(num_units, tile_units)
    tile_units = pl.cdiv(num_units, num_tiles)                  # rebalance -> less padding
    batch_tile = tile_units * UNIT
    b_pad = num_tiles * batch_tile
    return batch_tile, num_tiles, b_pad


def neural_network_2_forward_fm(xt, params):
    """Feature-major fast path (no HBM transpose).

    xt: (num_input, B) -- batch on the trailing (lane) axis.
    params: PyTorch-style {"w1": (h1, in), "b1": (h1, 1), ...}.
    Returns (1, B) float32.
    """
    w1, b1 = params["w1"], params["b1"]
    w2, b2 = params["w2"], params["b2"]
    w3, b3 = params["w3"], params["b3"]

    num_input, B = xt.shape
    h1 = w1.shape[0]
    h2 = w2.shape[0]
    out_dim = w3.shape[0]

    batch_tile, num_tiles, b_pad = _choose_batch_tiling(B)
    if b_pad != B:
        xt = jnp.pad(xt, ((0, 0), (0, b_pad - B)))

    const = lambda i: (0, 0)  # weights/biases: same block every step -> VMEM-resident

    out_t = pl.pallas_call(
        mlp_kernel,
        out_shape=jax.ShapeDtypeStruct((out_dim, b_pad), jnp.float32),
        grid=(num_tiles,),
        in_specs=[
            pl.BlockSpec((num_input, batch_tile), lambda i: (0, i)),  # x tile
            pl.BlockSpec((h1, num_input), const),                     # w1
            pl.BlockSpec((h1, 1), const),                             # b1
            pl.BlockSpec((h2, h1), const),                            # w2
            pl.BlockSpec((h2, 1), const),                             # b2
            pl.BlockSpec((out_dim, h2), const),                       # w3
            pl.BlockSpec((out_dim, 1), const),                        # b3
        ],
        out_specs=pl.BlockSpec((out_dim, batch_tile), lambda i: (0, i)),
        compiler_params=pltpu.CompilerParams(
            dimension_semantics=("parallel",),        # batch loop shards across TCs on v7x
            vmem_limit_bytes=VMEM_LIMIT_BYTES,        # raises v5e's 16 MiB default; < v7x 64 MiB
        ),
    )(xt, w1, b1, w2, b2, w3, b3)

    # Padded lanes carry bias-through-ReLU garbage; slice them off (lane-axis slice, cheap).
    return out_t[:, :B]


def neural_network_2_forward(x, params):
    """PyTorch-semantics wrapper: x (B, num_input) -> (B, 1).

    NOTE: this path pays one XLA transpose of x in HBM. If the producer can
    emit feature-major activations, call neural_network_2_forward_fm directly.
    """
    B = x.shape[0]
    out_fm = neural_network_2_forward_fm(x.T, params)  # (1, B), already sliced to B
    return out_fm.T  # slice-before-transpose already done inside the fm path


def init_params(key, num_input=4, num_hidden_1=8, num_hidden_2=8):
    """PyTorch-Linear-style init (uniform +/- 1/sqrt(fan_in)); weights (out, in), biases (out, 1)."""
    ks = jax.random.split(key, 6)

    def lin(kw, kb, fan_in, fan_out):
        bound = 1.0 / jnp.sqrt(jnp.float32(fan_in))
        w = jax.random.uniform(kw, (fan_out, fan_in), jnp.float32, -bound, bound)
        b = jax.random.uniform(kb, (fan_out, 1), jnp.float32, -bound, bound)
        return w, b

    w1, b1 = lin(ks[0], ks[1], num_input, num_hidden_1)
    w2, b2 = lin(ks[2], ks[3], num_hidden_1, num_hidden_2)
    w3, b3 = lin(ks[4], ks[5], num_hidden_2, 1)
    return {"w1": w1, "b1": b1, "w2": w2, "b2": b2, "w3": w3, "b3": b3}


def _reference_fm(xt, params):
    a1 = jnp.maximum(params["w1"] @ xt + params["b1"], 0.0)
    a2 = jnp.maximum(params["w2"] @ a1 + params["b2"], 0.0)
    return params["w3"] @ a2 + params["b3"]


if __name__ == "__main__":
    key = jax.random.PRNGKey(0)
    k_param, k_x = jax.random.split(key)

    num_input, num_hidden_1, num_hidden_2 = 4, 8, 8
    batch = 1024  # small; exercises a 2-step batch grid (tile = 512 after rebalancing)

    params = init_params(k_param, num_input, num_hidden_1, num_hidden_2)

    # Fast path: feature-major input (num_input, B) -- no wrapper transpose.
    xt = jax.random.normal(k_x, (num_input, batch), jnp.float32)
    out_fm = jax.block_until_ready(neural_network_2_forward_fm(xt, params))
    ref_fm = _reference_fm(xt, params)
    assert out_fm.shape == (1, batch)
    assert jnp.allclose(out_fm, ref_fm, atol=1e-5, rtol=1e-5)

    # Compatibility path: PyTorch-style (B, num_input) -> (B, 1), ragged batch (padding path).
    x_small = xt.T[:37]
    out_small = jax.block_until_ready(neural_network_2_forward(x_small, params))
    assert out_small.shape == (37, 1)
    assert jnp.allclose(out_small, ref_fm.T[:37], atol=1e-5, rtol=1e-5)

    print("KERNEL_OK")
</pallas_src>

<mosaic_0001>
module attributes {stable_mosaic.version = 11 : i64} {
  func.func @mlp_kernel(%arg0: i32, %arg1: memref<4x512xf32, #tpu.memory_space<vmem>>, %arg2: memref<8x4xf32, #tpu.memory_space<vmem>>, %arg3: memref<8x1xf32, #tpu.memory_space<vmem>>, %arg4: memref<8x8xf32, #tpu.memory_space<vmem>>, %arg5: memref<8x1xf32, #tpu.memory_space<vmem>>, %arg6: memref<1x8xf32, #tpu.memory_space<vmem>>, %arg7: memref<1x1xf32, #tpu.memory_space<vmem>>, %arg8: memref<1x512xf32, #tpu.memory_space<vmem>>) attributes {dimension_semantics = [#tpu.dimension_semantics<parallel>], iteration_bounds = array<i64: 2>, scalar_prefetch = 0 : i64, scratch_operands = 0 : i64, tpu.core_type = #tpu.core_type<tc>, window_params = [{transform_indices = @transform_0, window_bounds = array<i64: 4, 512>}, {pipeline_mode = #tpu.pipeline_mode<synchronous>, transform_indices = @transform_1, window_bounds = array<i64: 8, 4>}, {pipeline_mode = #tpu.pipeline_mode<synchronous>, transform_indices = @transform_2, window_bounds = array<i64: 8, 1>}, {pipeline_mode = #tpu.pipeline_mode<synchronous>, transform_indices = @transform_3, window_bounds = array<i64: 8, 8>}, {pipeline_mode = #tpu.pipeline_mode<synchronous>, transform_indices = @transform_4, window_bounds = array<i64: 8, 1>}, {pipeline_mode = #tpu.pipeline_mode<synchronous>, transform_indices = @transform_5, window_bounds = array<i64: 1, 8>}, {pipeline_mode = #tpu.pipeline_mode<synchronous>, transform_indices = @transform_6, window_bounds = array<i64: 1, 1>}, {transform_indices = @transform_7, window_bounds = array<i64: 1, 512>}]} {
    %c0 = arith.constant 0 : index
    %c0_0 = arith.constant 0 : index
    %0 = vector.load %arg1[%c0, %c0_0] : memref<4x512xf32, #tpu.memory_space<vmem>>, vector<4x512xf32>
    %c0_1 = arith.constant 0 : index
    %c0_2 = arith.constant 0 : index
    %1 = vector.load %arg2[%c0_1, %c0_2] : memref<8x4xf32, #tpu.memory_space<vmem>>, vector<8x4xf32>
    %cst = arith.constant dense<0.000000e+00> : vector<8x512xf32>
    %2 = tpu.matmul %1, %0, %cst {dimension_numbers = #tpu.dot_dimension_numbers<[1], [0], [0], [1], [0, 0, 1, 1], [], []>} : vector<8x4xf32>, vector<4x512xf32>, vector<8x512xf32> -> vector<8x512xf32>
    %c0_3 = arith.constant 0 : index
    %c0_4 = arith.constant 0 : index
    %3 = vector.load %arg3[%c0_3, %c0_4] : memref<8x1xf32, #tpu.memory_space<vmem>>, vector<8x1xf32>
    %4 = vector.broadcast %3 : vector<8x1xf32> to vector<8x512xf32>
    %5 = arith.addf %2, %4 : vector<8x512xf32>
    %cst_5 = arith.constant 0.000000e+00 : f32
    %6 = vector.broadcast %cst_5 : f32 to vector<8x512xf32>
    %7 = arith.maximumf %5, %6 : vector<8x512xf32>
    %c0_6 = arith.constant 0 : index
    %c0_7 = arith.constant 0 : index
    %8 = vector.load %arg4[%c0_6, %c0_7] : memref<8x8xf32, #tpu.memory_space<vmem>>, vector<8x8xf32>
    %cst_8 = arith.constant dense<0.000000e+00> : vector<8x512xf32>
    %9 = tpu.matmul %8, %7, %cst_8 {dimension_numbers = #tpu.dot_dimension_numbers<[1], [0], [0], [1], [0, 0, 1, 1], [], []>} : vector<8x8xf32>, vector<8x512xf32>, vector<8x512xf32> -> vector<8x512xf32>
    %c0_9 = arith.constant 0 : index
    %c0_10 = arith.constant 0 : index
    %10 = vector.load %arg5[%c0_9, %c0_10] : memref<8x1xf32, #tpu.memory_space<vmem>>, vector<8x1xf32>
    %11 = vector.broadcast %10 : vector<8x1xf32> to vector<8x512xf32>
    %12 = arith.addf %9, %11 : vector<8x512xf32>
    %cst_11 = arith.constant 0.000000e+00 : f32
    %13 = vector.broadcast %cst_11 : f32 to vector<8x512xf32>
    %14 = arith.maximumf %12, %13 : vector<8x512xf32>
    %c0_12 = arith.constant 0 : index
    %c0_13 = arith.constant 0 : index
    %15 = vector.load %arg6[%c0_12, %c0_13] : memref<1x8xf32, #tpu.memory_space<vmem>>, vector<1x8xf32>
    %cst_14 = arith.constant dense<0.000000e+00> : vector<1x512xf32>
    %16 = tpu.matmul %15, %14, %cst_14 {dimension_numbers = #tpu.dot_dimension_numbers<[1], [0], [0], [1], [0, 0, 1, 1], [], []>} : vector<1x8xf32>, vector<8x512xf32>, vector<1x512xf32> -> vector<1x512xf32>
    %c0_15 = arith.constant 0 : index
    %c0_16 = arith.constant 0 : index
    %17 = vector.load %arg7[%c0_15, %c0_16] : memref<1x1xf32, #tpu.memory_space<vmem>>, vector<1x1xf32>
    %18 = vector.broadcast %17 : vector<1x1xf32> to vector<1x512xf32>
    %19 = arith.addf %16, %18 : vector<1x512xf32>
    %c0_17 = arith.constant 0 : index
    %c0_18 = arith.constant 0 : index
    %20 = vector.load %arg8[%c0_17, %c0_18] : memref<1x512xf32, #tpu.memory_space<vmem>>, vector<1x512xf32>
    tpu.vector_store %arg8[%c0_17, %c0_18], %19 {strides = array<i32>} : memref<1x512xf32, #tpu.memory_space<vmem>>, vector<1x512xf32>,
    return
  }
  func.func @transform_0(%arg0: i32) -> (i32, i32) {
    %c0_i32 = arith.constant 0 : i32
    %c0_i32_0 = arith.constant 0 : i32
    return %c0_i32, %arg0 : i32, i32
  }
  func.func @transform_1(%arg0: i32) -> (i32, i32) {
    %c0_i32 = arith.constant 0 : i32
    %c0_i32_0 = arith.constant 0 : i32
    %c0_i32_1 = arith.constant 0 : i32
    return %c0_i32, %c0_i32_0 : i32, i32
  }
  func.func @transform_2(%arg0: i32) -> (i32, i32) {
    %c0_i32 = arith.constant 0 : i32
    %c0_i32_0 = arith.constant 0 : i32
    %c0_i32_1 = arith.constant 0 : i32
    return %c0_i32, %c0_i32_0 : i32, i32
  }
  func.func @transform_3(%arg0: i32) -> (i32, i32) {
    %c0_i32 = arith.constant 0 : i32
    %c0_i32_0 = arith.constant 0 : i32
    %c0_i32_1 = arith.constant 0 : i32
    return %c0_i32, %c0_i32_0 : i32, i32
  }
  func.func @transform_4(%arg0: i32) -> (i32, i32) {
    %c0_i32 = arith.constant 0 : i32
    %c0_i32_0 = arith.constant 0 : i32
    %c0_i32_1 = arith.constant 0 : i32
    return %c0_i32, %c0_i32_0 : i32, i32
  }
  func.func @transform_5(%arg0: i32) -> (i32, i32) {
    %c0_i32 = arith.constant 0 : i32
    %c0_i32_0 = arith.constant 0 : i32
    %c0_i32_1 = arith.constant 0 : i32
    return %c0_i32, %c0_i32_0 : i32, i32
  }
  func.func @transform_6(%arg0: i32) -> (i32, i32) {
    %c0_i32 = arith.constant 0 : i32
    %c0_i32_0 = arith.constant 0 : i32
    %c0_i32_1 = arith.constant 0 : i32
    return %c0_i32, %c0_i32_0 : i32, i32
  }
  func.func @transform_7(%arg0: i32) -> (i32, i32) {
    %c0_i32 = arith.constant 0 : i32
    %c0_i32_0 = arith.constant 0 : i32
    return %c0_i32, %arg0 : i32, i32
  }
}

</mosaic_0001>

<llo_original>
// kernel: tpu_custom_call.1
$region0: #{tpu_custom_call.1}
  #allocation0 [shape = 'u32[]', space=smem, size = 0x4, offset = 0x4, fixed_abs, tag = 'smem constant byte address 0x4 - core index']
  #allocation1 [shape = 'u32[144,128]{1,0:T(1,128)}', space=vmem, size = 0x12000, scoped, tag = 'internal scratch']
  #allocation2 [shape = 'f32[1,1]{1,0:T(1,128)S(1)}', space=vmem, size = 0x200, scoped, tag = 'scoped memory for tpu_custom_call.1']
  %s0 = inlined_call_operand.vmem [shape: f32[4,1024], index: 0, kind: input, shape index: {}]
  %s1 = inlined_call_operand.vmem [shape: f32[8,4], index: 1, kind: input, shape index: {}]
  %s2 = inlined_call_operand.vmem [shape: f32[8,1], index: 2, kind: input, shape index: {}]
  %s3 = inlined_call_operand.vmem [shape: f32[8,8], index: 3, kind: input, shape index: {}]
  %s4 = inlined_call_operand.vmem [shape: f32[8,1], index: 4, kind: input, shape index: {}]
  %s5 = inlined_call_operand.vmem [shape: f32[1,8], index: 5, kind: input, shape index: {}]
  %s6 = inlined_call_operand.<no memory space> [shape: f32[1,1], index: 6, kind: input, shape index: {}]
  %s7 = inlined_call_operand.hbm [shape: f32[1,1024], index: 7, kind: output, shape index: {}]
  %s8 = sld [smem:[#allocation0]]
  $region61: #{tpu_custom_call.1} parent=0
    _
  %s10 = ssub.s32 1, %s8
  %s11 = scalar_select 0, %s10, %s8
  %v12 = vstv %s6
  %13 = vst [vmem:[#allocation2] sm:$0x1] %v12
  $region1: #{tpu_custom_call.1} parent=0
    #allocation3 [shape = 'u8[4096]{0}', space=vmem, size = 0x1000, scoped, tag = 'output window, operand 0']
    #allocation4 [shape = 's32[2]{0}', space=sflag, size = 0x8, scoped, tag = 'scoped memory for tpu_custom_call.1']
    %14 = vsyncpa [#allocation4], 0
    %s15 = scalar_lea.sflag [#allocation4], 1
    %16 = vsyncpa %s15, 0
    loop: start=0, step=1, limit=4
    $region2: #{tpu_custom_call.1} parent=1 // loop_pre_header
      _
    $region3: #{tpu_custom_call.1} parent=1 // loop_header
      %s18 = sphi 0, %s22
      %p19 = scmp.ge.s32.totalorder %s18, 4
      %s28 = sphi 0, %s30
      %s31 = sphi 0, %s28
      %s32 = sphi 0, %s31
      %s48 = sphi 0, %s32
      %s52 = sphi 0, %s52
      %s54 = sphi 0, %s52
      %s55 = sphi 0, %s54
      %s69 = sphi 0, %s55
      %s73 = sphi 0, %s73
      %s75 = sphi 0, %s73
      %s76 = sphi 0, %s75
      %s90 = sphi 0, %s76
      %s94 = sphi 0, %s94
      %s96 = sphi 0, %s94
      %s97 = sphi 0, %s96
      %s111 = sphi 0, %s97
      %s115 = sphi 0, %s115
      %s117 = sphi 0, %s115
      %s118 = sphi 0, %s117
      %s132 = sphi 0, %s118
      %s136 = sphi 0, %s136
      %s138 = sphi 0, %s136
      %s139 = sphi 0, %s138
      %s153 = sphi 0, %s139
      %s157 = sphi 0, %s157
      %s159 = sphi 0, %s157
      %s160 = sphi 0, %s159
      %s174 = sphi 0, %s160
      %s180 = sphi 0, %s182
      %s183 = sphi 0, %s180
      %s184 = sphi 0, %s183
      %s200 = sphi 0, %s184
    $region4: #{tpu_custom_call.1} parent=1 // loop_header_branch
      %21 = sbr.rel (%p19) target = $region8
    $region5: #{tpu_custom_call.1} parent=1 // loop_body
      %s23 = ssub.s32 %s18, 1
      %s24 = ssub.s32 %s18, 2
      %s25 = sadd.s32 %s18, 1
      %s26 = ssub.s32 %s18, %s25
      %p27 = scmp.eq.s32.totalorder %s26, 0
      %s29 = sadd.s32 %s28, 1
      %s30 = scalar_select %p27, %s28, %s29
      %p33 = pneg %p27
      %p34 = scmp.eq.s32.totalorder %s18, 1
      %p35 = por %p33, %p34
      %p36 = scmp.ne.s32.totalorder %s28, %s31
      %p37 = scmp.eq.s32.totalorder %s18, 0
      %p38 = por %p36, %p37
      %p39 = scmp.ne.s32.totalorder %s28, %s31
      %p40 = scmp.eq.s32.totalorder %s23, 1
      %p41 = por %p39, %p40
      %p42 = scmp.ne.s32.totalorder %s31, %s32
      %p43 = scmp.eq.s32.totalorder %s23, 0
      %p44 = por %p42, %p43
      %p45 = scmp.ne.s32.totalorder %s31, %s32
      %p46 = scmp.eq.s32.totalorder %s24, 1
      %p47 = por %p45, %p46
      %p49 = scmp.ne.s32.totalorder %s32, %s48
      %p50 = scmp.eq.s32.totalorder %s24, 0
      %p51 = por %p49, %p50
      %s53 = sadd.s32 %s52, 1
      %p56 = scmp.eq.s32.totalorder %s18, 1
      %p57 = scmp.ne.s32.totalorder %s52, %s54
      %p58 = scmp.eq.s32.totalorder %s18, 0
      %p59 = por %p57, %p58
      %p60 = scmp.ne.s32.totalorder %s52, %s54
      %p61 = scmp.eq.s32.totalorder %s23, 1
      %p62 = por %p60, %p61
      %p63 = scmp.ne.s32.totalorder %s54, %s55
      %p64 = scmp.eq.s32.totalorder %s23, 0
      %p65 = por %p63, %p64
      %p66 = scmp.ne.s32.totalorder %s54, %s55
      %p67 = scmp.eq.s32.totalorder %s24, 1
      %p68 = por %p66, %p67
      %p70 = scmp.ne.s32.totalorder %s55, %s69
      %p71 = scmp.eq.s32.totalorder %s24, 0
      %p72 = por %p70, %p71
      %s74 = sadd.s32 %s73, 1
      %p77 = scmp.eq.s32.totalorder %s18, 1
      %p78 = scmp.ne.s32.totalorder %s73, %s75
      %p79 = scmp.eq.s32.totalorder %s18, 0
      %p80 = por %p78, %p79
      %p81 = scmp.ne.s32.totalorder %s73, %s75
      %p82 = scmp.eq.s32.totalorder %s23, 1
      %p83 = por %p81, %p82
      %p84 = scmp.ne.s32.totalorder %s75, %s76
      %p85 = scmp.eq.s32.totalorder %s23, 0
      %p86 = por %p84, %p85
      %p87 = scmp.ne.s32.totalorder %s75, %s76
      %p88 = scmp.eq.s32.totalorder %s24, 1
      %p89 = por %p87, %p88
      %p91 = scmp.ne.s32.totalorder %s76, %s90
      %p92 = scmp.eq.s32.totalorder %s24, 0
      %p93 = por %p91, %p92
      %s95 = sadd.s32 %s94, 1
      %p98 = scmp.eq.s32.totalorder %s18, 1
      %p99 = scmp.ne.s32.totalorder %s94, %s96
      %p100 = scmp.eq.s32.totalorder %s18, 0
      %p101 = por %p99, %p100
      %p102 = scmp.ne.s32.totalorder %s94, %s96
      %p103 = scmp.eq.s32.totalorder %s23, 1
      %p104 = por %p102, %p103
      %p105 = scmp.ne.s32.totalorder %s96, %s97
      %p106 = scmp.eq.s32.totalorder %s23, 0
      %p107 = por %p105, %p106
      %p108 = scmp.ne.s32.totalorder %s96, %s97
      %p109 = scmp.eq.s32.totalorder %s24, 1
      %p110 = por %p108, %p109
      %p112 = scmp.ne.s32.totalorder %s97, %s111
      %p113 = scmp.eq.s32.totalorder %s24, 0
      %p114 = por %p112, %p113
      %s116 = sadd.s32 %s115, 1
      %p119 = scmp.eq.s32.totalorder %s18, 1
      %p120 = scmp.ne.s32.totalorder %s115, %s117
      %p121 = scmp.eq.s32.totalorder %s18, 0
      %p122 = por %p120, %p121
      %p123 = scmp.ne.s32.totalorder %s115, %s117
      %p124 = scmp.eq.s32.totalorder %s23, 1
      %p125 = por %p123, %p124
      %p126 = scmp.ne.s32.totalorder %s117, %s118
      %p127 = scmp.eq.s32.totalorder %s23, 0
      %p128 = por %p126, %p127
      %p129 = scmp.ne.s32.totalorder %s117, %s118
      %p130 = scmp.eq.s32.totalorder %s24, 1
      %p131 = por %p129, %p130
      %p133 = scmp.ne.s32.totalorder %s118, %s132
      %p134 = scmp.eq.s32.totalorder %s24, 0
      %p135 = por %p133, %p134
      %s137 = sadd.s32 %s136, 1
      %p140 = scmp.eq.s32.totalorder %s18, 1
      %p141 = scmp.ne.s32.totalorder %s136, %s138
      %p142 = scmp.eq.s32.totalorder %s18, 0
      %p143 = por %p141, %p142
      %p144 = scmp.ne.s32.totalorder %s136, %s138
      %p145 = scmp.eq.s32.totalorder %s23, 1
      %p146 = por %p144, %p145
      %p147 = scmp.ne.s32.totalorder %s138, %s139
      %p148 = scmp.eq.s32.totalorder %s23, 0
      %p149 = por %p147, %p148
      %p150 = scmp.ne.s32.totalorder %s138, %s139
      %p151 = scmp.eq.s32.totalorder %s24, 1
      %p152 = por %p150, %p151
      %p154 = scmp.ne.s32.totalorder %s139, %s153
      %p155 = scmp.eq.s32.totalorder %s24, 0
      %p156 = por %p154, %p155
      %s158 = sadd.s32 %s157, 1
      %p161 = scmp.eq.s32.totalorder %s18, 1
      %p162 = scmp.ne.s32.totalorder %s157, %s159
      %p163 = scmp.eq.s32.totalorder %s18, 0
      %p164 = por %p162, %p163
      %p165 = scmp.ne.s32.totalorder %s157, %s159
      %p166 = scmp.eq.s32.totalorder %s23, 1
      %p167 = por %p165, %p166
      %p168 = scmp.ne.s32.totalorder %s159, %s160
      %p169 = scmp.eq.s32.totalorder %s23, 0
      %p170 = por %p168, %p169
      %p171 = scmp.ne.s32.totalorder %s159, %s160
      %p172 = scmp.eq.s32.totalorder %s24, 1
      %p173 = por %p171, %p172
      %p175 = scmp.ne.s32.totalorder %s160, %s174
      %p176 = scmp.eq.s32.totalorder %s24, 0
      %p177 = por %p175, %p176
      %s178 = ssub.s32 %s18, %s25
      %p179 = scmp.eq.s32.totalorder %s178, 0
      %s181 = sadd.s32 %s180, 1
      %s182 = scalar_select %p179, %s180, %s181
      %p185 = pneg %p179
      %p186 = scmp.eq.s32.totalorder %s18, 1
      %p187 = por %p185, %p186
      %p188 = scmp.ne.s32.totalorder %s180, %s183
      %p189 = scmp.eq.s32.totalorder %s18, 0
      %p190 = por %p188, %p189
      %p191 = scmp.ne.s32.totalorder %s180, %s183
      %p192 = scmp.eq.s32.totalorder %s23, 1
      %p193 = por %p191, %p192
      %p194 = scmp.ne.s32.totalorder %s183, %s184
      %p195 = scmp.eq.s32.totalorder %s23, 0
      %p196 = por %p194, %p195
      %p197 = scmp.ne.s32.totalorder %s183, %s184
      %p198 = scmp.eq.s32.totalorder %s24, 1
      %p199 = por %p197, %p198
      %p201 = scmp.ne.s32.totalorder %s184, %s200
      %p202 = scmp.eq.s32.totalorder %s24, 0
      %p203 = por %p201, %p202
      %p204 = scmp.le.s32.totalorder 1, %s18
      %p205 = scmp.lt.s32.totalorder %s18, 3
      %p206 = pnand %p204, %p205
      %p207 = pneg %p206
      // Predicated region
      $region9: #{tpu_custom_call.1} parent=5 // pred_check
        _
      $region10: #{tpu_custom_call.1} parent=5 // pred_check_branch
        %209 = sbr.rel (%p206) target = $region12
      $region11: #{tpu_custom_call.1} parent=5 // pred_region
        %s210 = ssub.s32 %s18, 1
        // Predicated region
        $region13: #{tpu_custom_call.1} parent=11 // pred_check
          %p211 = pneg %p65
        $region14: #{tpu_custom_call.1} parent=11 // pred_check_branch
          %213 = sbr.rel (%p211) target = $region16
        $region15: #{tpu_custom_call.1} parent=11 // pred_region
          _
        $region16: #{tpu_custom_call.1} parent=11 // pred_fallthru
          _
        // Predicated region
        $region17: #{tpu_custom_call.1} parent=11 // pred_check
          %p214 = pneg %p86
        $region18: #{tpu_custom_call.1} parent=11 // pred_check_branch
          %216 = sbr.rel (%p214) target = $region20
        $region19: #{tpu_custom_call.1} parent=11 // pred_region
          _
        $region20: #{tpu_custom_call.1} parent=11 // pred_fallthru
          _
        // Predicated region
        $region21: #{tpu_custom_call.1} parent=11 // pred_check
          %p217 = pneg %p107
        $region22: #{tpu_custom_call.1} parent=11 // pred_check_branch
          %219 = sbr.rel (%p217) target = $region24
        $region23: #{tpu_custom_call.1} parent=11 // pred_region
          _
        $region24: #{tpu_custom_call.1} parent=11 // pred_fallthru
          _
        // Predicated region
        $region25: #{tpu_custom_call.1} parent=11 // pred_check
          %p220 = pneg %p128
        $region26: #{tpu_custom_call.1} parent=11 // pred_check_branch
          %222 = sbr.rel (%p220) target = $region28
        $region27: #{tpu_custom_call.1} parent=11 // pred_region
          _
        $region28: #{tpu_custom_call.1} parent=11 // pred_fallthru
          _
        // Predicated region
        $region29: #{tpu_custom_call.1} parent=11 // pred_check
          %p223 = pneg %p149
        $region30: #{tpu_custom_call.1} parent=11 // pred_check_branch
          %225 = sbr.rel (%p223) target = $region32
        $region31: #{tpu_custom_call.1} parent=11 // pred_region
          _
        $region32: #{tpu_custom_call.1} parent=11 // pred_fallthru
          _
        // Predicated region
        $region33: #{tpu_custom_call.1} parent=11 // pred_check
          %p226 = pneg %p170
        $region34: #{tpu_custom_call.1} parent=11 // pred_check_branch
          %228 = sbr.rel (%p226) target = $region36
        $region35: #{tpu_custom_call.1} parent=11 // pred_region
          _
        $region36: #{tpu_custom_call.1} parent=11 // pred_fallthru
          _
      $region12: #{tpu_custom_call.1} parent=5 // pred_fallthru
        _
      %p229 = scmp.lt.s32.totalorder %s18, 2
      // Predicated region
      $region37: #{tpu_custom_call.1} parent=5 // pred_check
        %p230 = pneg %p229
      $region38: #{tpu_custom_call.1} parent=5 // pred_check_branch
        %232 = sbr.rel (%p230) target = $region40
      $region39: #{tpu_custom_call.1} parent=5 // pred_region
        // Predicated region
        $region41: #{tpu_custom_call.1} parent=39 // pred_check
          %p233 = pneg %p38
        $region42: #{tpu_custom_call.1} parent=39 // pred_check_branch
          %235 = sbr.rel (%p233) target = $region44
        $region43: #{tpu_custom_call.1} parent=39 // pred_region
          %s236 = smul.u32 4, %s18
          %p237 = scmp.lt.s32.totalorder %s236, 7
          %s238 = scalar_select %p237, %s236, 7
          %s239 = smul.addr %s238, 4
          %s240 = scalar_lea.vmem %s0, %s239
          %s241 = smul.u32 4, %s18
        $region44: #{tpu_custom_call.1} parent=39 // pred_fallthru
          _
      $region40: #{tpu_custom_call.1} parent=5 // pred_fallthru
        _
      %p242 = scmp.le.s32.totalorder 1, %s18
      %p243 = scmp.lt.s32.totalorder %s18, 3
      %p244 = pnand %p242, %p243
      %p245 = pneg %p244
      // Predicated region
      $region45: #{tpu_custom_call.1} parent=5 // pred_check
        _
      $region46: #{tpu_custom_call.1} parent=5 // pred_check_branch
        %247 = sbr.rel (%p244) target = $region48
      $region47: #{tpu_custom_call.1} parent=5 // pred_region
        %s248 = ssub.s32 %s18, 1
        %s249 = smul.u32 4, %s23
        %p250 = scmp.lt.s32.totalorder %s249, 7
        %s251 = scalar_select %p250, %s249, 7
        %s252 = smul.addr %s251, 4
        %s253 = scalar_lea.vmem %s0, %s252
        %p254 = pneg %p44
        %p255 = pneg %p41
        %p256 = pneg %p65
        %p257 = pneg %p62
        %p258 = pneg %p86
        %p259 = pneg %p83
        %p260 = pneg %p107
        %p261 = pneg %p104
        %p262 = pneg %p128
        %p263 = pneg %p125
        %p264 = pneg %p149
        %p265 = pneg %p146
        %p266 = pneg %p170
        %p267 = pneg %p167
        %p268 = pneg %p196
        %p269 = pneg %p193
        %s270 = sand.u32 %s183, 1
        %s271 = scalar_lea.sflag [#allocation4], %s270
        %s272 = sand.u32 %s183, 1
        %s273 = smul.addr %s272, 4
        %s274 = scalar_lea.vmem [#allocation3], %s273
        %s275 = smul.u32 4, %s23
        %p276 = scmp.lt.s32.totalorder %s275, 7
        %s277 = scalar_select %p276, %s275, 7
        %s278 = smul.addr %s277, 4
        %s279 = scalar_lea.vmem %s0, %s278
        %s280 = smul.u32 4, %s23
        %s281 = smul.u32 4, %s23
        %v282 = vld [vmem:[%s279] sm:$0xff]
        %v283 = vld [vmem:[%s279 + $0x8] sm:$0xff]
        %v284 = vld [vmem:[%s1] sm:$0xff]
        %v285 = vld [vmem:[%s2] sm:$0xff]
        %287 = vset.pattern.permute.xlu0 0
        %288 = vperm.xlu0 %287, %v285
        %v289 = vpop.permute.xlu0 %288
        %v293 = vcombine.high %v282, %v282
        %v294 = vcombine.high %v283, %v283
        %vm295 = vcmask 31744
        %v297 = vsel %vm295, %v284, 0
        %vm299 = vcmask 1043456
        %v300 = vsel %vm299, %v282, 0
        %v302 = vsel %vm299, %v293, 0
        %v304 = vsel %vm299, %v283, 0
        %v306 = vsel %vm299, %v294, 0
        %308 = vmatprep.subr.mxu0 %v302
        %309 = vmatpush1.msra.mxu0 %v300
        %310 = vmatprep.subr.mxu0 0.0
        %311 = vmatpush1.msra.mxu0 0.0
        %312 = vmatprep.subr.mxu0 0.0
        %313 = vmatpush1.msra.mxu0 0.0
        %314 = vmatprep.subr.mxu0 0.0
        %315 = vmatpush1.msra.mxu0 0.0
        %316 = vmatprep.subr.mxu0 0.0
        %317 = vmatpush1.msra.mxu0 0.0
        %318 = vmatprep.subr.mxu0 0.0
        %319 = vmatpush1.msra.mxu0 0.0
        %320 = vmatprep.subr.mxu0 0.0
        %321 = vmatpush1.msra.mxu0 0.0
        %322 = vmatprep.subr.mxu0 0.0
        %323 = vmatpush1.msra.mxu0 0.0
        %324 = vmatprep.subr.mxu0 0.0
        %325 = vmatpush1.msra.mxu0 0.0
        %326 = vmatprep.subr.mxu0 0.0
        %327 = vmatpush1.msra.mxu0 0.0
        %328 = vmatprep.subr.mxu0 0.0
        %329 = vmatpush1.msra.mxu0 0.0
        %330 = vmatprep.subr.mxu0 0.0
        %331 = vmatpush1.msra.mxu0 0.0
        %332 = vmatprep.subr.mxu0 0.0
        %333 = vmatpush1.msra.mxu0 0.0
        %334 = vmatprep.subr.mxu0 0.0
        %335 = vmatpush1.msra.mxu0 0.0
        %336 = vmatprep.subr.mxu0 0.0
        %337 = vmatpush1.msra.mxu0 0.0
        %338 = vmatprep.subr.mxu0 0.0
        %339 = vmatpush1.msra.mxu0 0.0
        %340 = vmatprep.subr.mxu0 0.0
        %341 = vmatpush1.msra.mxu0 0.0
        %342 = vmatprep.subr.mxu0 0.0
        %343 = vmatpush1.msra.mxu0 0.0
        %344 = vmatprep.subr.mxu0 0.0
        %345 = vmatpush1.msra.mxu0 0.0
        %346 = vmatprep.subr.mxu0 0.0
        %347 = vmatpush1.msra.mxu0 0.0
        %348 = vmatprep.subr.mxu0 0.0
        %349 = vmatpush1.msra.mxu0 0.0
        %350 = vmatprep.subr.mxu0 0.0
        %351 = vmatpush1.msra.mxu0 0.0
        %352 = vmatprep.subr.mxu0 0.0
        %353 = vmatpush1.msra.mxu0 0.0
        %354 = vmatprep.subr.mxu0 0.0
        %355 = vmatpush1.msra.mxu0 0.0
        %356 = vmatprep.subr.mxu0 0.0
        %357 = vmatpush1.msra.mxu0 0.0
        %358 = vmatprep.subr.mxu0 0.0
        %359 = vmatpush1.msra.mxu0 0.0
        %360 = vmatprep.subr.mxu0 0.0
        %361 = vmatpush1.msra.mxu0 0.0
        %362 = vmatprep.subr.mxu0 0.0
        %363 = vmatpush1.msra.mxu0 0.0
        %364 = vmatprep.subr.mxu0 0.0
        %365 = vmatpush1.msra.mxu0 0.0
        %366 = vmatprep.subr.mxu0 0.0
        %367 = vmatpush1.msra.mxu0 0.0
        %368 = vmatprep.subr.mxu0 0.0
        %369 = vmatpush1.msra.mxu0 0.0
        %370 = vmatprep.subr.mxu0 0.0
        %371 = vmatpush1.msra.mxu0 0.0
        %372 = vmatprep.mubr.f32.mxu0 0.0
        %373 = vmatmul.mubr.f32.gmra.mrb[0].mxu0 %v297
        %v374 = vpop.f32.mrb[0].mxu0
        %v375 = vadd.f32 %v289, %v374
        %v376 = vpop.f32.mrb[0].mxu0
        %v377 = vadd.f32 %v289, %v376
        %378 = vdwg.mxu0
        %379 = vmatprep.subr.mxu0 %v306
        %380 = vmatpush1.msra.mxu0 %v304
        %381 = vmatprep.subr.mxu0 0.0
        %382 = vmatpush1.msra.mxu0 0.0
        %383 = vmatprep.subr.mxu0 0.0
        %384 = vmatpush1.msra.mxu0 0.0
        %385 = vmatprep.subr.mxu0 0.0
        %386 = vmatpush1.msra.mxu0 0.0
        %387 = vmatprep.subr.mxu0 0.0
        %388 = vmatpush1.msra.mxu0 0.0
        %389 = vmatprep.subr.mxu0 0.0
        %390 = vmatpush1.msra.mxu0 0.0
        %391 = vmatprep.subr.mxu0 0.0
        %392 = vmatpush1.msra.mxu0 0.0
        %393 = vmatprep.subr.mxu0 0.0
        %394 = vmatpush1.msra.mxu0 0.0
        %395 = vmatprep.subr.mxu0 0.0
        %396 = vmatpush1.msra.mxu0 0.0
        %397 = vmatprep.subr.mxu0 0.0
        %398 = vmatpush1.msra.mxu0 0.0
        %399 = vmatprep.subr.mxu0 0.0
        %400 = vmatpush1.msra.mxu0 0.0
        %401 = vmatprep.subr.mxu0 0.0
        %402 = vmatpush1.msra.mxu0 0.0
        %403 = vmatprep.subr.mxu0 0.0
        %404 = vmatpush1.msra.mxu0 0.0
        %405 = vmatprep.subr.mxu0 0.0
        %406 = vmatpush1.msra.mxu0 0.0
        %407 = vmatprep.subr.mxu0 0.0
        %408 = vmatpush1.msra.mxu0 0.0
        %409 = vmatprep.subr.mxu0 0.0
        %410 = vmatpush1.msra.mxu0 0.0
        %411 = vmatprep.subr.mxu0 0.0
        %412 = vmatpush1.msra.mxu0 0.0
        %413 = vmatprep.subr.mxu0 0.0
        %414 = vmatpush1.msra.mxu0 0.0
        %415 = vmatprep.subr.mxu0 0.0
        %416 = vmatpush1.msra.mxu0 0.0
        %417 = vmatprep.subr.mxu0 0.0
        %418 = vmatpush1.msra.mxu0 0.0
        %419 = vmatprep.subr.mxu0 0.0
        %420 = vmatpush1.msra.mxu0 0.0
        %421 = vmatprep.subr.mxu0 0.0
        %422 = vmatpush1.msra.mxu0 0.0
        %423 = vmatprep.subr.mxu0 0.0
        %424 = vmatpush1.msra.mxu0 0.0
        %425 = vmatprep.subr.mxu0 0.0
        %426 = vmatpush1.msra.mxu0 0.0
        %427 = vmatprep.subr.mxu0 0.0
        %428 = vmatpush1.msra.mxu0 0.0
        %429 = vmatprep.subr.mxu0 0.0
        %430 = vmatpush1.msra.mxu0 0.0
        %431 = vmatprep.subr.mxu0 0.0
        %432 = vmatpush1.msra.mxu0 0.0
        %433 = vmatprep.subr.mxu0 0.0
        %434 = vmatpush1.msra.mxu0 0.0
        %435 = vmatprep.subr.mxu0 0.0
        %436 = vmatpush1.msra.mxu0 0.0
        %437 = vmatprep.subr.mxu0 0.0
        %438 = vmatpush1.msra.mxu0 0.0
        %439 = vmatprep.subr.mxu0 0.0
        %440 = vmatpush1.msra.mxu0 0.0
        %441 = vmatprep.subr.mxu0 0.0
        %442 = vmatpush1.msra.mxu0 0.0
        %443 = vmatprep.mubr.f32.mxu0 0.0
        %444 = vmatmul.mubr.f32.gmra.mrb[0].mxu0 %v297
        %v445 = vpop.f32.mrb[0].mxu0
        %v446 = vadd.f32 %v289, %v445
        %v447 = vpop.f32.mrb[0].mxu0
        %v448 = vadd.f32 %v289, %v447
        %449 = vdwg.mxu0
        %v450 = vmax.f32 %v375, 0.0
        %v451 = vmax.f32 %v377, 0.0
        %v452 = vmax.f32 %v446, 0.0
        %v453 = vmax.f32 %v448, 0.0
        %v454 = vld [vmem:[%s3] sm:$0xff]
        %v455 = vld [vmem:[%s4] sm:$0xff]
        %457 = vset.pattern.permute.xlu0 0
        %458 = vperm.xlu0 %457, %v455
        %v459 = vpop.permute.xlu0 %458
        %vm461 = vcmask 64512
        %v463 = vsel %vm461, %v454, 0
        %465 = vmatprep.subr.mxu0 %v451
        %466 = vmatpush1.msra.mxu0 %v450
        %467 = vmatprep.subr.mxu0 0.0
        %468 = vmatpush1.msra.mxu0 0.0
        %469 = vmatprep.subr.mxu0 0.0
        %470 = vmatpush1.msra.mxu0 0.0
        %471 = vmatprep.subr.mxu0 0.0
        %472 = vmatpush1.msra.mxu0 0.0
        %473 = vmatprep.subr.mxu0 0.0
        %474 = vmatpush1.msra.mxu0 0.0
        %475 = vmatprep.subr.mxu0 0.0
        %476 = vmatpush1.msra.mxu0 0.0
        %477 = vmatprep.subr.mxu0 0.0
        %478 = vmatpush1.msra.mxu0 0.0
        %479 = vmatprep.subr.mxu0 0.0
        %480 = vmatpush1.msra.mxu0 0.0
        %481 = vmatprep.subr.mxu0 0.0
        %482 = vmatpush1.msra.mxu0 0.0
        %483 = vmatprep.subr.mxu0 0.0
        %484 = vmatpush1.msra.mxu0 0.0
        %485 = vmatprep.subr.mxu0 0.0
        %486 = vmatpush1.msra.mxu0 0.0
        %487 = vmatprep.subr.mxu0 0.0
        %488 = vmatpush1.msra.mxu0 0.0
        %489 = vmatprep.subr.mxu0 0.0
        %490 = vmatpush1.msra.mxu0 0.0
        %491 = vmatprep.subr.mxu0 0.0
        %492 = vmatpush1.msra.mxu0 0.0
        %493 = vmatprep.subr.mxu0 0.0
        %494 = vmatpush1.msra.mxu0 0.0
        %495 = vmatprep.subr.mxu0 0.0
        %496 = vmatpush1.msra.mxu0 0.0
        %497 = vmatprep.subr.mxu0 0.0
        %498 = vmatpush1.msra.mxu0 0.0
        %499 = vmatprep.subr.mxu0 0.0
        %500 = vmatpush1.msra.mxu0 0.0
        %501 = vmatprep.subr.mxu0 0.0
        %502 = vmatpush1.msra.mxu0 0.0
        %503 = vmatprep.subr.mxu0 0.0
        %504 = vmatpush1.msra.mxu0 0.0
        %505 = vmatprep.subr.mxu0 0.0
        %506 = vmatpush1.msra.mxu0 0.0
        %507 = vmatprep.subr.mxu0 0.0
        %508 = vmatpush1.msra.mxu0 0.0
        %509 = vmatprep.subr.mxu0 0.0
        %510 = vmatpush1.msra.mxu0 0.0
        %511 = vmatprep.subr.mxu0 0.0
        %512 = vmatpush1.msra.mxu0 0.0
        %513 = vmatprep.subr.mxu0 0.0
        %514 = vmatpush1.msra.mxu0 0.0
        %515 = vmatprep.subr.mxu0 0.0
        %516 = vmatpush1.msra.mxu0 0.0
        %517 = vmatprep.subr.mxu0 0.0
        %518 = vmatpush1.msra.mxu0 0.0
        %519 = vmatprep.subr.mxu0 0.0
        %520 = vmatpush1.msra.mxu0 0.0
        %521 = vmatprep.subr.mxu0 0.0
        %522 = vmatpush1.msra.mxu0 0.0
        %523 = vmatprep.subr.mxu0 0.0
        %524 = vmatpush1.msra.mxu0 0.0
        %525 = vmatprep.subr.mxu0 0.0
        %526 = vmatpush1.msra.mxu0 0.0
        %527 = vmatprep.subr.mxu0 0.0
        %528 = vmatpush1.msra.mxu0 0.0
        %529 = vmatprep.mubr.f32.mxu0 0.0
        %530 = vmatmul.mubr.f32.gmra.mrb[0].mxu0 %v463
        %v531 = vpop.f32.mrb[0].mxu0
        %v532 = vadd.f32 %v459, %v531
        %v533 = vpop.f32.mrb[0].mxu0
        %v534 = vadd.f32 %v459, %v533
        %535 = vdwg.mxu0
        %536 = vmatprep.subr.mxu0 %v453
        %537 = vmatpush1.msra.mxu0 %v452
        %538 = vmatprep.subr.mxu0 0.0
        %539 = vmatpush1.msra.mxu0 0.0
        %540 = vmatprep.subr.mxu0 0.0
        %541 = vmatpush1.msra.mxu0 0.0
        %542 = vmatprep.subr.mxu0 0.0
        %543 = vmatpush1.msra.mxu0 0.0
        %544 = vmatprep.subr.mxu0 0.0
        %545 = vmatpush1.msra.mxu0 0.0
        %546 = vmatprep.subr.mxu0 0.0
        %547 = vmatpush1.msra.mxu0 0.0
        %548 = vmatprep.subr.mxu0 0.0
        %549 = vmatpush1.msra.mxu0 0.0
        %550 = vmatprep.subr.mxu0 0.0
        %551 = vmatpush1.msra.mxu0 0.0
        %552 = vmatprep.subr.mxu0 0.0
        %553 = vmatpush1.msra.mxu0 0.0
        %554 = vmatprep.subr.mxu0 0.0
        %555 = vmatpush1.msra.mxu0 0.0
        %556 = vmatprep.subr.mxu0 0.0
        %557 = vmatpush1.msra.mxu0 0.0
        %558 = vmatprep.subr.mxu0 0.0
        %559 = vmatpush1.msra.mxu0 0.0
        %560 = vmatprep.subr.mxu0 0.0
        %561 = vmatpush1.msra.mxu0 0.0
        %562 = vmatprep.subr.mxu0 0.0
        %563 = vmatpush1.msra.mxu0 0.0
        %564 = vmatprep.subr.mxu0 0.0
        %565 = vmatpush1.msra.mxu0 0.0
        %566 = vmatprep.subr.mxu0 0.0
        %567 = vmatpush1.msra.mxu0 0.0
        %568 = vmatprep.subr.mxu0 0.0
        %569 = vmatpush1.msra.mxu0 0.0
        %570 = vmatprep.subr.mxu0 0.0
        %571 = vmatpush1.msra.mxu0 0.0
        %572 = vmatprep.subr.mxu0 0.0
        %573 = vmatpush1.msra.mxu0 0.0
        %574 = vmatprep.subr.mxu0 0.0
        %575 = vmatpush1.msra.mxu0 0.0
        %576 = vmatprep.subr.mxu0 0.0
        %577 = vmatpush1.msra.mxu0 0.0
        %578 = vmatprep.subr.mxu0 0.0
        %579 = vmatpush1.msra.mxu0 0.0
        %580 = vmatprep.subr.mxu0 0.0
        %581 = vmatpush1.msra.mxu0 0.0
        %582 = vmatprep.subr.mxu0 0.0
        %583 = vmatpush1.msra.mxu0 0.0
        %584 = vmatprep.subr.mxu0 0.0
        %585 = vmatpush1.msra.mxu0 0.0
        %586 = vmatprep.subr.mxu0 0.0
        %587 = vmatpush1.msra.mxu0 0.0
        %588 = vmatprep.subr.mxu0 0.0
        %589 = vmatpush1.msra.mxu0 0.0
        %590 = vmatprep.subr.mxu0 0.0
        %591 = vmatpush1.msra.mxu0 0.0
        %592 = vmatprep.subr.mxu0 0.0
        %593 = vmatpush1.msra.mxu0 0.0
        %594 = vmatprep.subr.mxu0 0.0
        %595 = vmatpush1.msra.mxu0 0.0
        %596 = vmatprep.subr.mxu0 0.0
        %597 = vmatpush1.msra.mxu0 0.0
        %598 = vmatprep.subr.mxu0 0.0
        %599 = vmatpush1.msra.mxu0 0.0
        %600 = vmatprep.mubr.f32.mxu0 0.0
        %601 = vmatmul.mubr.f32.gmra.mrb[0].mxu0 %v463
        %v602 = vpop.f32.mrb[0].mxu0
        %v603 = vadd.f32 %v459, %v602
        %v604 = vpop.f32.mrb[0].mxu0
        %v605 = vadd.f32 %v459, %v604
        %606 = vdwg.mxu0
        %v607 = vmax.f32 %v532, 0.0
        %v608 = vmax.f32 %v534, 0.0
        %v609 = vmax.f32 %v603, 0.0
        %v610 = vmax.f32 %v605, 0.0
        %v611 = vld [vmem:[%s5] sm:$0x1]
        %v612 = vld [vmem:[#allocation2] sm:$0x1]
        %614 = vset.pattern.permute.xlu0 0
        %615 = vperm.xlu0 %614, %v612
        %v616 = vpop.permute.xlu0 %615
        %v618 = vlaneseq
        %v619 = vshrl.u32 %v618, 7
        %v620 = vsub.s32 0, %v619
        %v621 = vrot.slane %v616, %v620
        %v623 = vsel %vm461, %v611, 0
        %625 = vmatprep.subr.mxu0 %v608
        %626 = vmatpush1.msra.mxu0 %v607
        %627 = vmatprep.subr.mxu0 0.0
        %628 = vmatpush1.msra.mxu0 0.0
        %629 = vmatprep.subr.mxu0 0.0
        %630 = vmatpush1.msra.mxu0 0.0
        %631 = vmatprep.subr.mxu0 0.0
        %632 = vmatpush1.msra.mxu0 0.0
        %633 = vmatprep.subr.mxu0 0.0
        %634 = vmatpush1.msra.mxu0 0.0
        %635 = vmatprep.subr.mxu0 0.0
        %636 = vmatpush1.msra.mxu0 0.0
        %637 = vmatprep.subr.mxu0 0.0
        %638 = vmatpush1.msra.mxu0 0.0
        %639 = vmatprep.subr.mxu0 0.0
        %640 = vmatpush1.msra.mxu0 0.0
        %641 = vmatprep.subr.mxu0 0.0
        %642 = vmatpush1.msra.mxu0 0.0
        %643 = vmatprep.subr.mxu0 0.0
        %644 = vmatpush1.msra.mxu0 0.0
        %645 = vmatprep.subr.mxu0 0.0
        %646 = vmatpush1.msra.mxu0 0.0
        %647 = vmatprep.subr.mxu0 0.0
        %648 = vmatpush1.msra.mxu0 0.0
        %649 = vmatprep.subr.mxu0 0.0
        %650 = vmatpush1.msra.mxu0 0.0
        %651 = vmatprep.subr.mxu0 0.0
        %652 = vmatpush1.msra.mxu0 0.0
        %653 = vmatprep.subr.mxu0 0.0
        %654 = vmatpush1.msra.mxu0 0.0
        %655 = vmatprep.subr.mxu0 0.0
        %656 = vmatpush1.msra.mxu0 0.0
        %657 = vmatprep.subr.mxu0 0.0
        %658 = vmatpush1.msra.mxu0 0.0
        %659 = vmatprep.subr.mxu0 0.0
        %660 = vmatpush1.msra.mxu0 0.0
        %661 = vmatprep.subr.mxu0 0.0
        %662 = vmatpush1.msra.mxu0 0.0
        %663 = vmatprep.subr.mxu0 0.0
        %664 = vmatpush1.msra.mxu0 0.0
        %665 = vmatprep.subr.mxu0 0.0
        %666 = vmatpush1.msra.mxu0 0.0
        %667 = vmatprep.subr.mxu0 0.0
        %668 = vmatpush1.msra.mxu0 0.0
        %669 = vmatprep.subr.mxu0 0.0
        %670 = vmatpush1.msra.mxu0 0.0
        %671 = vmatprep.subr.mxu0 0.0
        %672 = vmatpush1.msra.mxu0 0.0
        %673 = vmatprep.subr.mxu0 0.0
        %674 = vmatpush1.msra.mxu0 0.0
        %675 = vmatprep.subr.mxu0 0.0
        %676 = vmatpush1.msra.mxu0 0.0
        %677 = vmatprep.subr.mxu0 0.0
        %678 = vmatpush1.msra.mxu0 0.0
        %679 = vmatprep.subr.mxu0 0.0
        %680 = vmatpush1.msra.mxu0 0.0
        %681 = vmatprep.subr.mxu0 0.0
        %682 = vmatpush1.msra.mxu0 0.0
        %683 = vmatprep.subr.mxu0 0.0
        %684 = vmatpush1.msra.mxu0 0.0
        %685 = vmatprep.subr.mxu0 0.0
        %686 = vmatpush1.msra.mxu0 0.0
        %687 = vmatprep.subr.mxu0 0.0
        %688 = vmatpush1.msra.mxu0 0.0
        %689 = vmatprep.mubr.f32.mxu0 0.0
        %690 = vmatmul.mubr.f32.gmra.mrb[0].mxu0 %v623
        %v691 = vpop.f32.mrb[0].mxu0
        %v692 = vadd.f32 %v621, %v691
        %v693 = vpop.f32.mrb[0].mxu0
        %v694 = vadd.f32 %v621, %v693
        %695 = vdwg.mxu0
        %696 = vmatprep.subr.mxu0 %v610
        %697 = vmatpush1.msra.mxu0 %v609
        %698 = vmatprep.subr.mxu0 0.0
        %699 = vmatpush1.msra.mxu0 0.0
        %700 = vmatprep.subr.mxu0 0.0
        %701 = vmatpush1.msra.mxu0 0.0
        %702 = vmatprep.subr.mxu0 0.0
        %703 = vmatpush1.msra.mxu0 0.0
        %704 = vmatprep.subr.mxu0 0.0
        %705 = vmatpush1.msra.mxu0 0.0
        %706 = vmatprep.subr.mxu0 0.0
        %707 = vmatpush1.msra.mxu0 0.0
        %708 = vmatprep.subr.mxu0 0.0
        %709 = vmatpush1.msra.mxu0 0.0
        %710 = vmatprep.subr.mxu0 0.0
        %711 = vmatpush1.msra.mxu0 0.0
        %712 = vmatprep.subr.mxu0 0.0
        %713 = vmatpush1.msra.mxu0 0.0
        %714 = vmatprep.subr.mxu0 0.0
        %715 = vmatpush1.msra.mxu0 0.0
        %716 = vmatprep.subr.mxu0 0.0
        %717 = vmatpush1.msra.mxu0 0.0
        %718 = vmatprep.subr.mxu0 0.0
        %719 = vmatpush1.msra.mxu0 0.0
        %720 = vmatprep.subr.mxu0 0.0
        %721 = vmatpush1.msra.mxu0 0.0
        %722 = vmatprep.subr.mxu0 0.0
        %723 = vmatpush1.msra.mxu0 0.0
        %724 = vmatprep.subr.mxu0 0.0
        %725 = vmatpush1.msra.mxu0 0.0
        %726 = vmatprep.subr.mxu0 0.0
        %727 = vmatpush1.msra.mxu0 0.0
        %728 = vmatprep.subr.mxu0 0.0
        %729 = vmatpush1.msra.mxu0 0.0
        %730 = vmatprep.subr.mxu0 0.0
        %731 = vmatpush1.msra.mxu0 0.0
        %732 = vmatprep.subr.mxu0 0.0
        %733 = vmatpush1.msra.mxu0 0.0
        %734 = vmatprep.subr.mxu0 0.0
        %735 = vmatpush1.msra.mxu0 0.0
        %736 = vmatprep.subr.mxu0 0.0
        %737 = vmatpush1.msra.mxu0 0.0
        %738 = vmatprep.subr.mxu0 0.0
        %739 = vmatpush1.msra.mxu0 0.0
        %740 = vmatprep.subr.mxu0 0.0
        %741 = vmatpush1.msra.mxu0 0.0
        %742 = vmatprep.subr.mxu0 0.0
        %743 = vmatpush1.msra.mxu0 0.0
        %744 = vmatprep.subr.mxu0 0.0
        %745 = vmatpush1.msra.mxu0 0.0
        %746 = vmatprep.subr.mxu0 0.0
        %747 = vmatpush1.msra.mxu0 0.0
        %748 = vmatprep.subr.mxu0 0.0
        %749 = vmatpush1.msra.mxu0 0.0
        %750 = vmatprep.subr.mxu0 0.0
        %751 = vmatpush1.msra.mxu0 0.0
        %752 = vmatprep.subr.mxu0 0.0
        %753 = vmatpush1.msra.mxu0 0.0
        %754 = vmatprep.subr.mxu0 0.0
        %755 = vmatpush1.msra.mxu0 0.0
        %756 = vmatprep.subr.mxu0 0.0
        %757 = vmatpush1.msra.mxu0 0.0
        %758 = vmatprep.subr.mxu0 0.0
        %759 = vmatpush1.msra.mxu0 0.0
        %760 = vmatprep.mubr.f32.mxu0 0.0
        %761 = vmatmul.mubr.f32.gmra.mrb[0].mxu0 %v623
        %v762 = vpop.f32.mrb[0].mxu0
        %v763 = vadd.f32 %v621, %v762
        %v764 = vpop.f32.mrb[0].mxu0
        %v765 = vadd.f32 %v621, %v764
        %766 = vdwg.mxu0
        %v771 = vcombine.low %v692, %v694
        %v772 = vcombine.low %v763, %v765
        %v774 = vunpack.c.l.s4 1966171168
        %v775 = vunpack.c.0.s8 %v774
        %v776 = vlaneseq
        %v777 = vshrl.u32 %v776, 7
        %v778 = vsub.s32 %v775, %v777
        %v779 = vrot.slane %v771, %v778
        %v781 = vunpack.c.l.s4 1966171168
        %v782 = vunpack.c.0.s8 %v781
        %v783 = vlaneseq
        %v784 = vshrl.u32 %v783, 7
        %v785 = vsub.s32 %v782, %v784
        %v786 = vrot.slane %v772, %v785
        %v787 = vcombine.low %v779, %v786
        %v789 = vunpack.c.l.s4 1966171168
        %v790 = vunpack.c.0.s8 %v789
        %v791 = vlaneseq
        %v792 = vshrl.u32 %v791, 7
        %v793 = vsub.s32 %v790, %v792
        %v794 = vrot.slane %v787, %v793
        %v796 = vlaneseq
        %vm797 = vcmp.ge.s32.totalorder %v796, 0
        %vm798 = vcmp.lt.s32.totalorder %v796, 512
        %vm799 = vmand %vm797, %vm798
        %800 = vst.msk [vmem:[%s274] sm:$0xf] %vm799, %v794
        %s801 = sand.u32 %s183, 1
        %s802 = scalar_lea.sflag [#allocation4], %s801
        %s803 = sand.u32 %s183, 1
        %s804 = smul.addr %s803, 4
        %s805 = scalar_lea.vmem [#allocation3], %s804
        // Predicated region
        $region49: #{tpu_custom_call.1} parent=47 // pred_check
          %p806 = pneg %p193
        $region50: #{tpu_custom_call.1} parent=47 // pred_check_branch
          %808 = sbr.rel (%p806) target = $region52
        $region51: #{tpu_custom_call.1} parent=47 // pred_region
          %s809 = smul.u32 4, %s23
          %s811 = ssub.s32 64, 64
          %812 = vsyncadd %s802, %s811
          %s813 = smul.addr %s809, 16
          %s814 = scalar_lea.hbm %s7, %s813
          %s816 = sshll.u32 %s805, 4
          %s817 = int_to_ptr.vmem [resolvable:$true] %s816
          %819 = dma.vmem_to_hbm [thread:$0]  %s817, 64, %s814, %s802
        $region52: #{tpu_custom_call.1} parent=47 // pred_fallthru
          _
      $region48: #{tpu_custom_call.1} parent=5 // pred_fallthru
        _
      %p820 = scmp.le.s32.totalorder 2, %s18
      // Predicated region
      $region53: #{tpu_custom_call.1} parent=5 // pred_check
        %p821 = pneg %p820
      $region54: #{tpu_custom_call.1} parent=5 // pred_check_branch
        %823 = sbr.rel (%p821) target = $region56
      $region55: #{tpu_custom_call.1} parent=5 // pred_region
        %s824 = ssub.s32 %s18, 2
        // Predicated region
        $region57: #{tpu_custom_call.1} parent=55 // pred_check
          %p825 = pneg %p199
        $region58: #{tpu_custom_call.1} parent=55 // pred_check_branch
          %827 = sbr.rel (%p825) target = $region60
        $region59: #{tpu_custom_call.1} parent=55 // pred_region
          %s828 = sand.u32 %s184, 1
          %s829 = scalar_lea.sflag [#allocation4], %s828
          %s830 = sand.u32 %s184, 1
          %s831 = smul.addr %s830, 4
          %s832 = scalar_lea.vmem [#allocation3], %s831
          %833 = dma.done %s829, 64
        $region60: #{tpu_custom_call.1} parent=55 // pred_fallthru
          _
      $region56: #{tpu_custom_call.1} parent=5 // pred_fallthru
        _
    $region6: #{tpu_custom_call.1} parent=1 // loop_footer
      %s22 = sadd.s32 1, %s18
    $region7: #{tpu_custom_call.1} parent=1 // loop_footer_branch
      %17 = sbr.rel target = $region3
    $region8: #{tpu_custom_call.1} parent=1 // loop_exit
      _
    %834 = vsyncpa [#allocation4], 1
    %s835 = scalar_lea.sflag [#allocation4], 1
    %836 = vsyncpa %s835, 1

</llo_original>
